<compile_context>
chip_gen: v6e
topology: v6e:2x2x1
jax: 0.10.0
libtpu: 0.0.40
codegen_flags: <defaults>
</compile_context>

<pallas_src>
import jax
import jax.numpy as jnp
from jax.experimental import pallas as pl
from jax.experimental.pallas import tpu as pltpu

H1, H2, H3 = 128, 64, 32          # hidden widths of the MLP
LANE = 128                        # TPU lane width


def _round_up(n, m):
    return ((n + m - 1) // m) * m


def mlp_kernel(x_ref, w_ref, b_ref, o_ref):
    """One batch tile: 3x (Linear+ReLU) on the MXU, 32->1 layer as VPU reduce, sigmoid."""
    in_pad = x_ref.shape[1]        # static (padded input feature dim)

    # Layer 1: (TB, in_pad) @ (in_pad, 128)   -- bf16 MXU, f32 accumulate.
    h = jnp.dot(x_ref[...], w_ref[0:in_pad, :],
                preferred_element_type=jnp.float32)
    h = jnp.maximum(h + b_ref[0:1, :], 0.0)

    # Layer 2: (TB, 128) @ (128, 128)  -- W2 zero-padded from (128, 64).
    h = jnp.dot(h.astype(jnp.bfloat16), w_ref[in_pad:in_pad + H1, :],
                preferred_element_type=jnp.float32)
    h = jnp.maximum(h + b_ref[1:2, :], 0.0)        # lanes >= 64 stay exactly 0

    # Layer 3: (TB, 128) @ (128, 128)  -- W3 zero-padded from (64, 32).
    h = jnp.dot(h.astype(jnp.bfloat16), w_ref[in_pad + H1:in_pad + 2 * H1, :],
                preferred_element_type=jnp.float32)
    h = jnp.maximum(h + b_ref[2:3, :], 0.0)        # lanes >= 32 stay exactly 0

    # Layer 4 (32 -> 1): elementwise multiply + lane reduction (VPU/XLU)
    # instead of a wasted 1-lane-wide MXU matmul; b4 folded into the epilogue.
    logit = jnp.sum(h * b_ref[3:4, :], axis=-1, keepdims=True) + b_ref[4:5, 0:1]

    o_ref[...] = jax.nn.sigmoid(logit)


def pack_params(params, in_pad):
    """Pack the 4 Linear layers into one bf16 weight slab and one f32 bias slab."""
    (w1, b1), (w2, b2), (w3, b3), (w4, b4) = params
    in_dim = w1.shape[0]

    w1p = jnp.zeros((in_pad, LANE), jnp.float32).at[:in_dim, :H1].set(w1)
    w2p = jnp.zeros((H1, LANE), jnp.float32).at[:, :H2].set(w2)
    w3p = jnp.zeros((H1, LANE), jnp.float32).at[:H2, :H3].set(w3)
    w_packed = jnp.concatenate([w1p, w2p, w3p], axis=0).astype(jnp.bfloat16)

    b_packed = jnp.zeros((8, LANE), jnp.float32)
    b_packed = b_packed.at[0, :H1].set(b1.reshape(-1))
    b_packed = b_packed.at[1, :H2].set(b2.reshape(-1))
    b_packed = b_packed.at[2, :H3].set(b3.reshape(-1))
    b_packed = b_packed.at[3, :H3].set(w4.reshape(-1))      # final weight as a row
    b_packed = b_packed.at[4, 0].set(jnp.reshape(b4, ()))   # final bias (scalar)
    return w_packed, b_packed


def independent_predictor_forward(x, params, *, tile_b=512):
    """x: (B, 10*fig) float32.  params: list of (W (in,out), b (1,out)) tuples."""
    B, in_dim = x.shape
    in_pad = _round_up(in_dim, 16)                       # bf16 sublane alignment
    tile_b = max(16, _round_up(min(tile_b, _round_up(B, 16)), 16))
    b_pad = _round_up(B, tile_b)
    grid = (b_pad // tile_b,)

    w_packed, b_packed = pack_params(params, in_pad)

    # Pad batch/features once in the wrapper; cast activations to bf16 for the MXU.
    x_p = jnp.zeros((b_pad, in_pad), jnp.bfloat16)
    x_p = x_p.at[:B, :in_dim].set(x.astype(jnp.bfloat16))

    flops = 2 * B * (in_dim * H1 + H1 * H2 + H2 * H3 + H3)
    bytes_accessed = (x_p.size * 2 + w_packed.size * 2 + b_packed.size * 4
                      + b_pad * 4)
    cost = pl.CostEstimate(flops=flops, transcendentals=B,
                           bytes_accessed=bytes_accessed)

    out = pl.pallas_call(
        mlp_kernel,
        out_shape=jax.ShapeDtypeStruct((b_pad, 1), jnp.float32),
        grid=grid,
        in_specs=[
            pl.BlockSpec((tile_b, in_pad), lambda i: (i, 0)),
            # Constant index maps: parameters stay resident in VMEM across steps.
            pl.BlockSpec((w_packed.shape[0], LANE), lambda i: (0, 0)),
            pl.BlockSpec((8, LANE), lambda i: (0, 0)),
        ],
        out_specs=pl.BlockSpec((tile_b, 1), lambda i: (i, 0)),
        compiler_params=pltpu.CompilerParams(
            dimension_semantics=("parallel",)),
        cost_estimate=cost,
    )(x_p, w_packed, b_packed)

    return out[:B]


def init_linear(key, in_features, out_features):
    """PyTorch nn.Linear default init: U(-1/sqrt(in), 1/sqrt(in))."""
    kw, kb = jax.random.split(key)
    bound = 1.0 / jnp.sqrt(jnp.float32(in_features))
    # stored as (in, out) so the kernel does x @ W + b  (== x @ W_pt.T + b)
    w = jax.random.uniform(kw, (in_features, out_features), jnp.float32,
                           minval=-bound, maxval=bound)
    b = jax.random.uniform(kb, (1, out_features), jnp.float32,
                           minval=-bound, maxval=bound)
    return w, b


if __name__ == "__main__":
    fig = 4
    in_dim = 10 * fig      # 40
    batch = 300            # non-multiple of the tile -> exercises padding + grid

    key = jax.random.PRNGKey(0)
    k_x, k1, k2, k3, k4 = jax.random.split(key, 5)

    x = jax.random.normal(k_x, (batch, in_dim), dtype=jnp.float32)
    params = [
        init_linear(k1, in_dim, 128),
        init_linear(k2, 128, 64),
        init_linear(k3, 64, 32),
        init_linear(k4, 32, 1),
    ]

    out = independent_predictor_forward(x, params, tile_b=128)
    out = jax.block_until_ready(out)

    # Pure-JAX reference mirroring the kernel's bf16 inputs / f32 accumulation.
    h = x
    for i, (w, b) in enumerate(params):
        if i < 3:  # layers that run on the MXU in bf16
            h = h.astype(jnp.bfloat16).astype(jnp.float32)
            w = w.astype(jnp.bfloat16).astype(jnp.float32)
        h = h @ w + b
        if i < 3:
            h = jnp.maximum(h, 0.0)
    ref = jax.nn.sigmoid(h)

    assert out.shape == (batch, 1), out.shape
    assert jnp.allclose(out, ref, atol=1e-2, rtol=1e-2), \
        float(jnp.max(jnp.abs(out - ref)))

    print("KERNEL_OK")
</pallas_src>

<mosaic_0001>
module attributes {stable_mosaic.version = 11 : i64} {
  func.func @mlp_kernel(%arg0: i32, %arg1: memref<128x48xbf16, #tpu.memory_space<vmem>>, %arg2: memref<304x128xbf16, #tpu.memory_space<vmem>>, %arg3: memref<8x128xf32, #tpu.memory_space<vmem>>, %arg4: memref<128x1xf32, #tpu.memory_space<vmem>>) attributes {dimension_semantics = [#tpu.dimension_semantics<parallel>], iteration_bounds = array<i64: 3>, scalar_prefetch = 0 : i64, scratch_operands = 0 : i64, tpu.core_type = #tpu.core_type<tc>, window_params = [{transform_indices = @transform_0, window_bounds = array<i64: 128, 48>}, {pipeline_mode = #tpu.pipeline_mode<synchronous>, transform_indices = @transform_1, window_bounds = array<i64: 304, 128>}, {pipeline_mode = #tpu.pipeline_mode<synchronous>, transform_indices = @transform_2, window_bounds = array<i64: 8, 128>}, {transform_indices = @transform_3, window_bounds = array<i64: 128, 1>}]} {
    %c0 = arith.constant 0 : index
    %c0_0 = arith.constant 0 : index
    %0 = vector.load %arg1[%c0, %c0_0] : memref<128x48xbf16, #tpu.memory_space<vmem>>, vector<128x48xbf16>
    %c0_1 = arith.constant 0 : index
    %c0_2 = arith.constant 0 : index
    %1 = vector.load %arg2[%c0_1, %c0_2] : memref<304x128xbf16, #tpu.memory_space<vmem>>, vector<48x128xbf16>
    %cst = arith.constant dense<0.000000e+00> : vector<128x128xf32>
    %2 = tpu.matmul %0, %1, %cst {dimension_numbers = #tpu.dot_dimension_numbers<[1], [0], [0], [1], [0, 0, 1, 1], [], []>} : vector<128x48xbf16>, vector<48x128xbf16>, vector<128x128xf32> -> vector<128x128xf32>
    %c0_3 = arith.constant 0 : index
    %c0_4 = arith.constant 0 : index
    %3 = vector.load %arg3[%c0_3, %c0_4] : memref<8x128xf32, #tpu.memory_space<vmem>>, vector<1x128xf32>
    %4 = vector.broadcast %3 : vector<1x128xf32> to vector<128x128xf32>
    %5 = arith.addf %2, %4 : vector<128x128xf32>
    %cst_5 = arith.constant 0.000000e+00 : f32
    %6 = vector.broadcast %cst_5 : f32 to vector<128x128xf32>
    %7 = arith.maximumf %5, %6 : vector<128x128xf32>
    %8 = arith.truncf %7 : vector<128x128xf32> to vector<128x128xbf16>
    %c48 = arith.constant 48 : index
    %c0_6 = arith.constant 0 : index
    %9 = vector.load %arg2[%c48, %c0_6] : memref<304x128xbf16, #tpu.memory_space<vmem>>, vector<128x128xbf16>
    %cst_7 = arith.constant dense<0.000000e+00> : vector<128x128xf32>
    %10 = tpu.matmul %8, %9, %cst_7 {dimension_numbers = #tpu.dot_dimension_numbers<[1], [0], [0], [1], [0, 0, 1, 1], [], []>} : vector<128x128xbf16>, vector<128x128xbf16>, vector<128x128xf32> -> vector<128x128xf32>
    %c1 = arith.constant 1 : index
    %c0_8 = arith.constant 0 : index
    %11 = vector.load %arg3[%c1, %c0_8] : memref<8x128xf32, #tpu.memory_space<vmem>>, vector<1x128xf32>
    %12 = vector.broadcast %11 : vector<1x128xf32> to vector<128x128xf32>
    %13 = arith.addf %10, %12 : vector<128x128xf32>
    %cst_9 = arith.constant 0.000000e+00 : f32
    %14 = vector.broadcast %cst_9 : f32 to vector<128x128xf32>
    %15 = arith.maximumf %13, %14 : vector<128x128xf32>
    %16 = arith.truncf %15 : vector<128x128xf32> to vector<128x128xbf16>
    %c176 = arith.constant 176 : index
    %c0_10 = arith.constant 0 : index
    %17 = vector.load %arg2[%c176, %c0_10] : memref<304x128xbf16, #tpu.memory_space<vmem>>, vector<128x128xbf16>
    %cst_11 = arith.constant dense<0.000000e+00> : vector<128x128xf32>
    %18 = tpu.matmul %16, %17, %cst_11 {dimension_numbers = #tpu.dot_dimension_numbers<[1], [0], [0], [1], [0, 0, 1, 1], [], []>} : vector<128x128xbf16>, vector<128x128xbf16>, vector<128x128xf32> -> vector<128x128xf32>
    %c2 = arith.constant 2 : index
    %c0_12 = arith.constant 0 : index
    %19 = vector.load %arg3[%c2, %c0_12] : memref<8x128xf32, #tpu.memory_space<vmem>>, vector<1x128xf32>
    %20 = vector.broadcast %19 : vector<1x128xf32> to vector<128x128xf32>
    %21 = arith.addf %18, %20 : vector<128x128xf32>
    %cst_13 = arith.constant 0.000000e+00 : f32
    %22 = vector.broadcast %cst_13 : f32 to vector<128x128xf32>
    %23 = arith.maximumf %21, %22 : vector<128x128xf32>
    %c3 = arith.constant 3 : index
    %c0_14 = arith.constant 0 : index
    %24 = vector.load %arg3[%c3, %c0_14] : memref<8x128xf32, #tpu.memory_space<vmem>>, vector<1x128xf32>
    %25 = vector.broadcast %24 : vector<1x128xf32> to vector<128x128xf32>
    %26 = arith.mulf %23, %25 : vector<128x128xf32>
    %cst_15 = arith.constant dense<0.000000e+00> : vector<128xf32>
    %27 = vector.multi_reduction <add>, %26, %cst_15 [1] : vector<128x128xf32> to vector<128xf32>
    %28 = vector.shape_cast %27 : vector<128xf32> to vector<128x1xf32>
    %c4 = arith.constant 4 : index
    %c0_16 = arith.constant 0 : index
    %29 = vector.load %arg3[%c4, %c0_16] : memref<8x128xf32, #tpu.memory_space<vmem>>, vector<1x1xf32>
    %30 = vector.broadcast %29 : vector<1x1xf32> to vector<128x1xf32>
    %31 = arith.addf %28, %30 : vector<128x1xf32>
    %32 = arith.negf %31 : vector<128x1xf32>
    %33 = math.exp %32 : vector<128x1xf32>
    %cst_17 = arith.constant 1.000000e+00 : f32
    %34 = vector.broadcast %cst_17 : f32 to vector<128x1xf32>
    %35 = arith.addf %34, %33 : vector<128x1xf32>
    %36 = arith.divf %34, %35 : vector<128x1xf32>
    %c0_18 = arith.constant 0 : index
    %c0_19 = arith.constant 0 : index
    %37 = vector.load %arg4[%c0_18, %c0_19] : memref<128x1xf32, #tpu.memory_space<vmem>>, vector<128x1xf32>
    tpu.vector_store %arg4[%c0_18, %c0_19], %36 {strides = array<i32>} : memref<128x1xf32, #tpu.memory_space<vmem>>, vector<128x1xf32>,
    return
  }
  func.func @transform_0(%arg0: i32) -> (i32, i32) {
    %c0_i32 = arith.constant 0 : i32
    %c0_i32_0 = arith.constant 0 : i32
    return %arg0, %c0_i32 : i32, i32
  }
  func.func @transform_1(%arg0: i32) -> (i32, i32) {
    %c0_i32 = arith.constant 0 : i32
    %c0_i32_0 = arith.constant 0 : i32
    %c0_i32_1 = arith.constant 0 : i32
    return %c0_i32, %c0_i32_0 : i32, i32
  }
  func.func @transform_2(%arg0: i32) -> (i32, i32) {
    %c0_i32 = arith.constant 0 : i32
    %c0_i32_0 = arith.constant 0 : i32
    %c0_i32_1 = arith.constant 0 : i32
    return %c0_i32, %c0_i32_0 : i32, i32
  }
  func.func @transform_3(%arg0: i32) -> (i32, i32) {
    %c0_i32 = arith.constant 0 : i32
    %c0_i32_0 = arith.constant 0 : i32
    return %arg0, %c0_i32 : i32, i32
  }
}

</mosaic_0001>

<llo_original>
// kernel: tpu_custom_call.1
$region0: #{tpu_custom_call.1}
  #allocation0 [shape = 'u32[]', space=smem, size = 0x4, offset = 0x4, fixed_abs, tag = 'smem constant byte address 0x4 - core index']
  #allocation1 [shape = 'u32[144,128]{1,0:T(1,128)}', space=vmem, size = 0x12000, scoped, tag = 'internal scratch']
  %s0 = inlined_call_operand.vmem [shape: bf16[384,48], index: 0, kind: input, shape index: {}]
  %s1 = inlined_call_operand.vmem [shape: bf16[304,128], index: 1, kind: input, shape index: {}]
  %s2 = inlined_call_operand.vmem [shape: f32[8,128], index: 2, kind: input, shape index: {}]
  %s3 = inlined_call_operand.vmem [shape: f32[384,1], index: 3, kind: output, shape index: {}]
  %s4 = sld [smem:[#allocation0]]
  $region45: #{tpu_custom_call.1} parent=0
    _
  %s6 = ssub.s32 1, %s4
  %s7 = scalar_select 0, %s6, %s4
  loop: start=0, step=1, limit=5
  $region2: #{tpu_custom_call.1} parent=0 // loop_pre_header
    _
  $region3: #{tpu_custom_call.1} parent=0 // loop_header
    %s9 = sphi 0, %s13
    %p10 = scmp.ge.s32.totalorder %s9, 5
    %s19 = sphi 0, %s21
    %s22 = sphi 0, %s19
    %s23 = sphi 0, %s22
    %s39 = sphi 0, %s23
    %s43 = sphi 0, %s43
    %s45 = sphi 0, %s43
    %s46 = sphi 0, %s45
    %s60 = sphi 0, %s46
    %s64 = sphi 0, %s64
    %s66 = sphi 0, %s64
    %s67 = sphi 0, %s66
    %s81 = sphi 0, %s67
    %s87 = sphi 0, %s89
    %s90 = sphi 0, %s87
    %s91 = sphi 0, %s90
    %s107 = sphi 0, %s91
  $region4: #{tpu_custom_call.1} parent=0 // loop_header_branch
    %12 = sbr.rel (%p10) target = $region8
  $region5: #{tpu_custom_call.1} parent=0 // loop_body
    %s14 = ssub.s32 %s9, 1
    %s15 = ssub.s32 %s9, 2
    %s16 = sadd.s32 %s9, 1
    %s17 = ssub.s32 %s9, %s16
    %p18 = scmp.eq.s32.totalorder %s17, 0
    %s20 = sadd.s32 %s19, 1
    %s21 = scalar_select %p18, %s19, %s20
    %p24 = pneg %p18
    %p25 = scmp.eq.s32.totalorder %s9, 2
    %p26 = por %p24, %p25
    %p27 = scmp.ne.s32.totalorder %s19, %s22
    %p28 = scmp.eq.s32.totalorder %s9, 0
    %p29 = por %p27, %p28
    %p30 = scmp.ne.s32.totalorder %s19, %s22
    %p31 = scmp.eq.s32.totalorder %s14, 2
    %p32 = por %p30, %p31
    %p33 = scmp.ne.s32.totalorder %s22, %s23
    %p34 = scmp.eq.s32.totalorder %s14, 0
    %p35 = por %p33, %p34
    %p36 = scmp.ne.s32.totalorder %s22, %s23
    %p37 = scmp.eq.s32.totalorder %s15, 2
    %p38 = por %p36, %p37
    %p40 = scmp.ne.s32.totalorder %s23, %s39
    %p41 = scmp.eq.s32.totalorder %s15, 0
    %p42 = por %p40, %p41
    %s44 = sadd.s32 %s43, 1
    %p47 = scmp.eq.s32.totalorder %s9, 2
    %p48 = scmp.ne.s32.totalorder %s43, %s45
    %p49 = scmp.eq.s32.totalorder %s9, 0
    %p50 = por %p48, %p49
    %p51 = scmp.ne.s32.totalorder %s43, %s45
    %p52 = scmp.eq.s32.totalorder %s14, 2
    %p53 = por %p51, %p52
    %p54 = scmp.ne.s32.totalorder %s45, %s46
    %p55 = scmp.eq.s32.totalorder %s14, 0
    %p56 = por %p54, %p55
    %p57 = scmp.ne.s32.totalorder %s45, %s46
    %p58 = scmp.eq.s32.totalorder %s15, 2
    %p59 = por %p57, %p58
    %p61 = scmp.ne.s32.totalorder %s46, %s60
    %p62 = scmp.eq.s32.totalorder %s15, 0
    %p63 = por %p61, %p62
    %s65 = sadd.s32 %s64, 1
    %p68 = scmp.eq.s32.totalorder %s9, 2
    %p69 = scmp.ne.s32.totalorder %s64, %s66
    %p70 = scmp.eq.s32.totalorder %s9, 0
    %p71 = por %p69, %p70
    %p72 = scmp.ne.s32.totalorder %s64, %s66
    %p73 = scmp.eq.s32.totalorder %s14, 2
    %p74 = por %p72, %p73
    %p75 = scmp.ne.s32.totalorder %s66, %s67
    %p76 = scmp.eq.s32.totalorder %s14, 0
    %p77 = por %p75, %p76
    %p78 = scmp.ne.s32.totalorder %s66, %s67
    %p79 = scmp.eq.s32.totalorder %s15, 2
    %p80 = por %p78, %p79
    %p82 = scmp.ne.s32.totalorder %s67, %s81
    %p83 = scmp.eq.s32.totalorder %s15, 0
    %p84 = por %p82, %p83
    %s85 = ssub.s32 %s9, %s16
    %p86 = scmp.eq.s32.totalorder %s85, 0
    %s88 = sadd.s32 %s87, 1
    %s89 = scalar_select %p86, %s87, %s88
    %p92 = pneg %p86
    %p93 = scmp.eq.s32.totalorder %s9, 2
    %p94 = por %p92, %p93
    %p95 = scmp.ne.s32.totalorder %s87, %s90
    %p96 = scmp.eq.s32.totalorder %s9, 0
    %p97 = por %p95, %p96
    %p98 = scmp.ne.s32.totalorder %s87, %s90
    %p99 = scmp.eq.s32.totalorder %s14, 2
    %p100 = por %p98, %p99
    %p101 = scmp.ne.s32.totalorder %s90, %s91
    %p102 = scmp.eq.s32.totalorder %s14, 0
    %p103 = por %p101, %p102
    %p104 = scmp.ne.s32.totalorder %s90, %s91
    %p105 = scmp.eq.s32.totalorder %s15, 2
    %p106 = por %p104, %p105
    %p108 = scmp.ne.s32.totalorder %s91, %s107
    %p109 = scmp.eq.s32.totalorder %s15, 0
    %p110 = por %p108, %p109
    %p111 = scmp.le.s32.totalorder 1, %s9
    %p112 = scmp.lt.s32.totalorder %s9, 4
    %p113 = pnand %p111, %p112
    %p114 = pneg %p113
    // Predicated region
    $region9: #{tpu_custom_call.1} parent=5 // pred_check
      _
    $region10: #{tpu_custom_call.1} parent=5 // pred_check_branch
      %116 = sbr.rel (%p113) target = $region12
    $region11: #{tpu_custom_call.1} parent=5 // pred_region
      %s117 = ssub.s32 %s9, 1
      // Predicated region
      $region13: #{tpu_custom_call.1} parent=11 // pred_check
        %p118 = pneg %p56
      $region14: #{tpu_custom_call.1} parent=11 // pred_check_branch
        %120 = sbr.rel (%p118) target = $region16
      $region15: #{tpu_custom_call.1} parent=11 // pred_region
        _
      $region16: #{tpu_custom_call.1} parent=11 // pred_fallthru
        _
      // Predicated region
      $region17: #{tpu_custom_call.1} parent=11 // pred_check
        %p121 = pneg %p77
      $region18: #{tpu_custom_call.1} parent=11 // pred_check_branch
        %123 = sbr.rel (%p121) target = $region20
      $region19: #{tpu_custom_call.1} parent=11 // pred_region
        _
      $region20: #{tpu_custom_call.1} parent=11 // pred_fallthru
        _
    $region12: #{tpu_custom_call.1} parent=5 // pred_fallthru
      _
    %p124 = scmp.lt.s32.totalorder %s9, 3
    // Predicated region
    $region21: #{tpu_custom_call.1} parent=5 // pred_check
      %p125 = pneg %p124
    $region22: #{tpu_custom_call.1} parent=5 // pred_check_branch
      %127 = sbr.rel (%p125) target = $region24
    $region23: #{tpu_custom_call.1} parent=5 // pred_region
      // Predicated region
      $region25: #{tpu_custom_call.1} parent=23 // pred_check
        %p128 = pneg %p29
      $region26: #{tpu_custom_call.1} parent=23 // pred_check_branch
        %130 = sbr.rel (%p128) target = $region28
      $region27: #{tpu_custom_call.1} parent=23 // pred_region
        %s131 = smul.u32 16, %s9
        %p132 = scmp.lt.s32.totalorder %s131, 47
        %s133 = scalar_select %p132, %s131, 47
        %s134 = smul.addr %s133, 4
        %s135 = scalar_lea.vmem %s0, %s134
        %s136 = smul.u32 16, %s9
      $region28: #{tpu_custom_call.1} parent=23 // pred_fallthru
        _
    $region24: #{tpu_custom_call.1} parent=5 // pred_fallthru
      _
    %p137 = scmp.le.s32.totalorder 1, %s9
    %p138 = scmp.lt.s32.totalorder %s9, 4
    %p139 = pnand %p137, %p138
    %p140 = pneg %p139
    // Predicated region
    $region29: #{tpu_custom_call.1} parent=5 // pred_check
      _
    $region30: #{tpu_custom_call.1} parent=5 // pred_check_branch
      %142 = sbr.rel (%p139) target = $region32
    $region31: #{tpu_custom_call.1} parent=5 // pred_region
      %s143 = ssub.s32 %s9, 1
      %s144 = smul.u32 16, %s14
      %p145 = scmp.lt.s32.totalorder %s144, 47
      %s146 = scalar_select %p145, %s144, 47
      %s147 = smul.addr %s146, 4
      %s148 = scalar_lea.vmem %s0, %s147
      %p149 = pneg %p35
      %p150 = pneg %p32
      %p151 = pneg %p56
      %p152 = pneg %p53
      %p153 = pneg %p77
      %p154 = pneg %p74
      %p155 = pneg %p103
      %p156 = pneg %p100
      %s157 = smul.u32 16, %s14
      %p158 = scmp.lt.s32.totalorder %s157, 47
      %s159 = scalar_select %p158, %s157, 47
      %s160 = smul.addr %s159, 8
      %s161 = scalar_lea.vmem %s3, %s160
      %s162 = smul.u32 16, %s14
      %p163 = scmp.lt.s32.totalorder %s162, 47
      %s164 = scalar_select %p163, %s162, 47
      %s165 = smul.addr %s164, 4
      %s166 = scalar_lea.vmem %s0, %s165
      %s167 = smul.u32 16, %s14
      %s168 = smul.u32 16, %s14
      %p169 = scmp.lt.s32.totalorder %s168, 47
      %s170 = scalar_select %p169, %s168, 47
      %s171 = smul.addr %s170, 8
      %s172 = scalar_lea.vmem %s3, %s171
      %s173 = smul.u32 16, %s14
      %v175 = vld [vmem:[%s166] sm:$0xf]
      %v176 = vld [vmem:[%s166 + $0x4] sm:$0xf]
      %v177 = vld [vmem:[%s166 + $0x8] sm:$0xf]
      %v178 = vld [vmem:[%s166 + $0xc] sm:$0xf]
      %v179 = vld [vmem:[%s166 + $0x10] sm:$0xf]
      %v180 = vld [vmem:[%s166 + $0x14] sm:$0xf]
      %v181 = vld [vmem:[%s166 + $0x18] sm:$0xf]
      %v182 = vld [vmem:[%s166 + $0x1c] sm:$0xf]
      %v183 = vld [vmem:[%s166 + $0x20] sm:$0xf]
      %v184 = vld [vmem:[%s166 + $0x24] sm:$0xf]
      %v185 = vld [vmem:[%s166 + $0x28] sm:$0xf]
      %v186 = vld [vmem:[%s166 + $0x2c] sm:$0xf]
      %v187 = vld [vmem:[%s166 + $0x30] sm:$0xf]
      %v188 = vld [vmem:[%s166 + $0x34] sm:$0xf]
      %v189 = vld [vmem:[%s166 + $0x38] sm:$0xf]
      %v190 = vld [vmem:[%s166 + $0x3c] sm:$0xf]
      %v191 = vld [vmem:[%s1] sm:$0xf]
      %v192 = vld [vmem:[%s1 + $0x4] sm:$0xf]
      %v193 = vld [vmem:[%s1 + $0x8] sm:$0xf]
      %v194 = vld [vmem:[%s1 + $0xc] sm:$0xf]
      %v195 = vld [vmem:[%s1 + $0x10] sm:$0xf]
      %v196 = vld [vmem:[%s1 + $0x14] sm:$0xf]
      %v197 = vld [vmem:[%s2] sm:$0x1]
      %v198 = vlaneseq
      %v199 = vshrl.u32 %v198, 7
      %v200 = vsub.s32 0, %v199
      %v201 = vrot.slane %v197, %v200
      %v218 = vunpack.c.l.b16 %v175
      %v219 = vunpack.c.l.b16 %v176
      %v220 = vunpack.c.l.b16 %v177
      %v221 = vunpack.c.l.b16 %v178
      %v222 = vunpack.c.l.b16 %v179
      %v223 = vunpack.c.l.b16 %v180
      %v224 = vunpack.c.l.b16 %v181
      %v225 = vunpack.c.l.b16 %v182
      %v226 = vunpack.c.l.b16 %v183
      %v227 = vunpack.c.l.b16 %v184
      %v228 = vunpack.c.l.b16 %v185
      %v229 = vunpack.c.l.b16 %v186
      %v230 = vunpack.c.l.b16 %v187
      %v231 = vunpack.c.l.b16 %v188
      %v232 = vunpack.c.l.b16 %v189
      %v233 = vunpack.c.l.b16 %v190
      %v234 = vpack.c.b16 %v219, %v218
      %v235 = vpack.c.b16 %v221, %v220
      %v236 = vpack.c.b16 %v223, %v222
      %v237 = vpack.c.b16 %v225, %v224
      %v238 = vpack.c.b16 %v227, %v226
      %v239 = vpack.c.b16 %v229, %v228
      %v240 = vpack.c.b16 %v231, %v230
      %v241 = vpack.c.b16 %v233, %v232
      %v248 = vunpack.c.l.b16 %v191
      %v249 = vunpack.c.l.b16 %v192
      %v250 = vunpack.c.l.b16 %v193
      %v251 = vunpack.c.l.b16 %v194
      %v252 = vunpack.c.l.b16 %v195
      %v253 = vunpack.c.l.b16 %v196
      %v254 = vpack.c.b16 %v249, %v248
      %v255 = vpack.c.b16 %v251, %v250
      %v256 = vpack.c.b16 %v253, %v252
      %vm260 = vcmask 392192
      %v262 = vsel %vm260, %v234, 0
      %v265 = vsel %vm260, %v235, 0
      %v268 = vsel %vm260, %v236, 0
      %v271 = vsel %vm260, %v237, 0
      %v274 = vsel %vm260, %v238, 0
      %v277 = vsel %vm260, %v239, 0
      %v280 = vsel %vm260, %v240, 0
      %v283 = vsel %vm260, %v241, 0
      %285 = vmatprep.subr.bf16.mxu0 0
      %286 = vmatpush1.bf16.msra.mxu0 0
      %287 = vmatprep.subr.bf16.mxu0 0
      %288 = vmatpush1.bf16.msra.mxu0 0
      %289 = vmatprep.subr.bf16.mxu0 0
      %290 = vmatpush1.bf16.msra.mxu0 0
      %291 = vmatprep.subr.bf16.mxu0 0
      %292 = vmatpush1.bf16.msra.mxu0 0
      %293 = vmatprep.subr.bf16.mxu0 0
      %294 = vmatpush1.bf16.msra.mxu0 0
      %295 = vmatprep.subr.bf16.mxu0 0
      %296 = vmatpush1.bf16.msra.mxu0 %v256
      %297 = vmatprep.subr.bf16.mxu0 0
      %298 = vmatpush1.bf16.msra.mxu0 %v255
      %299 = vmatprep.subr.bf16.mxu0 0
      %300 = vmatpush1.bf16.msra.mxu0 %v254
      %301 = vmatprep.subr.bf16.mxu0 0
      %302 = vmatpush2.bf16.msra.mxu0 0
      %303 = vmatprep.subr.bf16.mxu0 0
      %304 = vmatpush2.bf16.msra.mxu0 0
      %305 = vmatprep.subr.bf16.mxu0 0
      %306 = vmatpush2.bf16.msra.mxu0 0
      %307 = vmatprep.subr.bf16.mxu0 0
      %308 = vmatpush2.bf16.msra.mxu0 0
      %309 = vmatprep.subr.bf16.mxu0 0
      %310 = vmatpush2.bf16.msra.mxu0 0
      %311 = vmatprep.subr.bf16.mxu0 0
      %312 = vmatpush2.bf16.msra.mxu0 0
      %313 = vmatprep.subr.bf16.mxu0 0
      %314 = vmatpush2.bf16.msra.mxu0 0
      %315 = vmatprep.subr.bf16.mxu0 0
      %316 = vmatpush2.bf16.msra.mxu0 0
      %317 = vmatprep.mubr.bf16.mxu0 0
      %318 = vmatmul.mubr.bf16.gmra.mxu0 %v262
      %v319 = vpop.f32.mrf.mxu0
      %v320 = vadd.f32 %v201, %v319
      %v321 = vpop.f32.mrf.mxu0
      %v322 = vpop.f32.mrf.mxu0
      %v323 = vadd.f32 %v201, %v322
      %v324 = vpop.f32.mrf.mxu0
      %325 = vmatprep.mubr.bf16.mxu0 0
      %326 = vmatmul.mubr.bf16.gmra.mxu0 %v265
      %v327 = vpop.f32.mrf.mxu0
      %v328 = vadd.f32 %v201, %v327
      %v329 = vpop.f32.mrf.mxu0
      %v330 = vpop.f32.mrf.mxu0
      %v331 = vadd.f32 %v201, %v330
      %v332 = vpop.f32.mrf.mxu0
      %333 = vmatprep.mubr.bf16.mxu0 0
      %334 = vmatmul.mubr.bf16.gmra.mxu0 %v268
      %v335 = vpop.f32.mrf.mxu0
      %v336 = vadd.f32 %v201, %v335
      %v337 = vpop.f32.mrf.mxu0
      %v338 = vpop.f32.mrf.mxu0
      %v339 = vadd.f32 %v201, %v338
      %v340 = vpop.f32.mrf.mxu0
      %341 = vmatprep.mubr.bf16.mxu0 0
      %342 = vmatmul.mubr.bf16.gmra.mxu0 %v271
      %v343 = vpop.f32.mrf.mxu0
      %v344 = vadd.f32 %v201, %v343
      %v345 = vpop.f32.mrf.mxu0
      %v346 = vpop.f32.mrf.mxu0
      %v347 = vadd.f32 %v201, %v346
      %v348 = vpop.f32.mrf.mxu0
      %349 = vmatprep.mubr.bf16.mxu0 0
      %350 = vmatmul.mubr.bf16.gmra.mxu0 %v274
      %v351 = vpop.f32.mrf.mxu0
      %v352 = vadd.f32 %v201, %v351
      %v353 = vpop.f32.mrf.mxu0
      %v354 = vpop.f32.mrf.mxu0
      %v355 = vadd.f32 %v201, %v354
      %v356 = vpop.f32.mrf.mxu0
      %357 = vmatprep.mubr.bf16.mxu0 0
      %358 = vmatmul.mubr.bf16.gmra.mxu0 %v277
      %v359 = vpop.f32.mrf.mxu0
      %v360 = vadd.f32 %v201, %v359
      %v361 = vpop.f32.mrf.mxu0
      %v362 = vpop.f32.mrf.mxu0
      %v363 = vadd.f32 %v201, %v362
      %v364 = vpop.f32.mrf.mxu0
      %365 = vmatprep.mubr.bf16.mxu0 0
      %366 = vmatmul.mubr.bf16.gmra.mxu0 %v280
      %v367 = vpop.f32.mrf.mxu0
      %v368 = vadd.f32 %v201, %v367
      %v369 = vpop.f32.mrf.mxu0
      %v370 = vpop.f32.mrf.mxu0
      %v371 = vadd.f32 %v201, %v370
      %v372 = vpop.f32.mrf.mxu0
      %373 = vmatprep.mubr.bf16.mxu0 0
      %374 = vmatmul.mubr.bf16.gmra.mxu0 %v283
      %v375 = vpop.f32.mrf.mxu0
      %v376 = vadd.f32 %v201, %v375
      %v377 = vpop.f32.mrf.mxu0
      %v378 = vpop.f32.mrf.mxu0
      %v379 = vadd.f32 %v201, %v378
      %v380 = vpop.f32.mrf.mxu0
      %381 = vdwg.mxu0
      %v382 = vmax.f32 %v320, 0.0
      %v383 = vmax.f32 %v323, 0.0
      %v384 = vmax.f32 %v328, 0.0
      %v385 = vmax.f32 %v331, 0.0
      %v386 = vmax.f32 %v336, 0.0
      %v387 = vmax.f32 %v339, 0.0
      %v388 = vmax.f32 %v344, 0.0
      %v389 = vmax.f32 %v347, 0.0
      %v390 = vmax.f32 %v352, 0.0
      %v391 = vmax.f32 %v355, 0.0
      %v392 = vmax.f32 %v360, 0.0
      %v393 = vmax.f32 %v363, 0.0
      %v394 = vmax.f32 %v368, 0.0
      %v395 = vmax.f32 %v371, 0.0
      %v396 = vmax.f32 %v376, 0.0
      %v397 = vmax.f32 %v379, 0.0
      %v398 = vpack.c.bf16 %v383, %v382
      %v399 = vpack.c.bf16 %v385, %v384
      %v400 = vpack.c.bf16 %v387, %v386
      %v401 = vpack.c.bf16 %v389, %v388
      %v402 = vpack.c.bf16 %v391, %v390
      %v403 = vpack.c.bf16 %v393, %v392
      %v404 = vpack.c.bf16 %v395, %v394
      %v405 = vpack.c.bf16 %v397, %v396
      %v406 = vld [vmem:[%s1 + $0x18] sm:$0xf]
      %v407 = vld [vmem:[%s1 + $0x1c] sm:$0xf]
      %v408 = vld [vmem:[%s1 + $0x20] sm:$0xf]
      %v409 = vld [vmem:[%s1 + $0x24] sm:$0xf]
      %v410 = vld [vmem:[%s1 + $0x28] sm:$0xf]
      %v411 = vld [vmem:[%s1 + $0x2c] sm:$0xf]
      %v412 = vld [vmem:[%s1 + $0x30] sm:$0xf]
      %v413 = vld [vmem:[%s1 + $0x34] sm:$0xf]
      %v414 = vld [vmem:[%s1 + $0x38] sm:$0xf]
      %v415 = vld [vmem:[%s1 + $0x3c] sm:$0xf]
      %v416 = vld [vmem:[%s1 + $0x40] sm:$0xf]
      %v417 = vld [vmem:[%s1 + $0x44] sm:$0xf]
      %v418 = vld [vmem:[%s1 + $0x48] sm:$0xf]
      %v419 = vld [vmem:[%s1 + $0x4c] sm:$0xf]
      %v420 = vld [vmem:[%s1 + $0x50] sm:$0xf]
      %v421 = vld [vmem:[%s1 + $0x54] sm:$0xf]
      %v422 = vld [vmem:[%s2 + $0x1] sm:$0x1]
      %v423 = vlaneseq
      %v424 = vshrl.u32 %v423, 7
      %v425 = vsub.s32 0, %v424
      %v426 = vrot.slane %v422, %v425
      %v443 = vunpack.c.l.b16 %v406
      %v444 = vunpack.c.l.b16 %v407
      %v445 = vunpack.c.l.b16 %v408
      %v446 = vunpack.c.l.b16 %v409
      %v447 = vunpack.c.l.b16 %v410
      %v448 = vunpack.c.l.b16 %v411
      %v449 = vunpack.c.l.b16 %v412
      %v450 = vunpack.c.l.b16 %v413
      %v451 = vunpack.c.l.b16 %v414
      %v452 = vunpack.c.l.b16 %v415
      %v453 = vunpack.c.l.b16 %v416
      %v454 = vunpack.c.l.b16 %v417
      %v455 = vunpack.c.l.b16 %v418
      %v456 = vunpack.c.l.b16 %v419
      %v457 = vunpack.c.l.b16 %v420
      %v458 = vunpack.c.l.b16 %v421
      %v459 = vpack.c.b16 %v444, %v443
      %v460 = vpack.c.b16 %v446, %v445
      %v461 = vpack.c.b16 %v448, %v447
      %v462 = vpack.c.b16 %v450, %v449
      %v463 = vpack.c.b16 %v452, %v451
      %v464 = vpack.c.b16 %v454, %v453
      %v465 = vpack.c.b16 %v456, %v455
      %v466 = vpack.c.b16 %v458, %v457
      %475 = vmatprep.subr.bf16.mxu0 0
      %476 = vmatpush1.bf16.msra.mxu0 %v466
      %477 = vmatprep.subr.bf16.mxu0 0
      %478 = vmatpush1.bf16.msra.mxu0 %v465
      %479 = vmatprep.subr.bf16.mxu0 0
      %480 = vmatpush1.bf16.msra.mxu0 %v464
      %481 = vmatprep.subr.bf16.mxu0 0
      %482 = vmatpush1.bf16.msra.mxu0 %v463
      %483 = vmatprep.subr.bf16.mxu0 0
      %484 = vmatpush1.bf16.msra.mxu0 %v462
      %485 = vmatprep.subr.bf16.mxu0 0
      %486 = vmatpush1.bf16.msra.mxu0 %v461
      %487 = vmatprep.subr.bf16.mxu0 0
      %488 = vmatpush1.bf16.msra.mxu0 %v460
      %489 = vmatprep.subr.bf16.mxu0 0
      %490 = vmatpush1.bf16.msra.mxu0 %v459
      %491 = vmatprep.subr.bf16.mxu0 0
      %492 = vmatpush2.bf16.msra.mxu0 0
      %493 = vmatprep.subr.bf16.mxu0 0
      %494 = vmatpush2.bf16.msra.mxu0 0
      %495 = vmatprep.subr.bf16.mxu0 0
      %496 = vmatpush2.bf16.msra.mxu0 0
      %497 = vmatprep.subr.bf16.mxu0 0
      %498 = vmatpush2.bf16.msra.mxu0 0
      %499 = vmatprep.subr.bf16.mxu0 0
      %500 = vmatpush2.bf16.msra.mxu0 0
      %501 = vmatprep.subr.bf16.mxu0 0
      %502 = vmatpush2.bf16.msra.mxu0 0
      %503 = vmatprep.subr.bf16.mxu0 0
      %504 = vmatpush2.bf16.msra.mxu0 0
      %505 = vmatprep.subr.bf16.mxu0 0
      %506 = vmatpush2.bf16.msra.mxu0 0
      %507 = vmatprep.mubr.bf16.mxu0 0
      %508 = vmatmul.mubr.bf16.gmra.mxu0 %v398
      %v509 = vpop.f32.mrf.mxu0
      %v510 = vadd.f32 %v426, %v509
      %v511 = vpop.f32.mrf.mxu0
      %v512 = vpop.f32.mrf.mxu0
      %v513 = vadd.f32 %v426, %v512
      %v514 = vpop.f32.mrf.mxu0
      %515 = vmatprep.mubr.bf16.mxu0 0
      %516 = vmatmul.mubr.bf16.gmra.mxu0 %v399
      %v517 = vpop.f32.mrf.mxu0
      %v518 = vadd.f32 %v426, %v517
      %v519 = vpop.f32.mrf.mxu0
      %v520 = vpop.f32.mrf.mxu0
      %v521 = vadd.f32 %v426, %v520
      %v522 = vpop.f32.mrf.mxu0
      %523 = vmatprep.mubr.bf16.mxu0 0
      %524 = vmatmul.mubr.bf16.gmra.mxu0 %v400
      %v525 = vpop.f32.mrf.mxu0
      %v526 = vadd.f32 %v426, %v525
      %v527 = vpop.f32.mrf.mxu0
      %v528 = vpop.f32.mrf.mxu0
      %v529 = vadd.f32 %v426, %v528
      %v530 = vpop.f32.mrf.mxu0
      %531 = vmatprep.mubr.bf16.mxu0 0
      %532 = vmatmul.mubr.bf16.gmra.mxu0 %v401
      %v533 = vpop.f32.mrf.mxu0
      %v534 = vadd.f32 %v426, %v533
      %v535 = vpop.f32.mrf.mxu0
      %v536 = vpop.f32.mrf.mxu0
      %v537 = vadd.f32 %v426, %v536
      %v538 = vpop.f32.mrf.mxu0
      %539 = vmatprep.mubr.bf16.mxu0 0
      %540 = vmatmul.mubr.bf16.gmra.mxu0 %v402
      %v541 = vpop.f32.mrf.mxu0
      %v542 = vadd.f32 %v426, %v541
      %v543 = vpop.f32.mrf.mxu0
      %v544 = vpop.f32.mrf.mxu0
      %v545 = vadd.f32 %v426, %v544
      %v546 = vpop.f32.mrf.mxu0
      %547 = vmatprep.mubr.bf16.mxu0 0
      %548 = vmatmul.mubr.bf16.gmra.mxu0 %v403
      %v549 = vpop.f32.mrf.mxu0
      %v550 = vadd.f32 %v426, %v549
      %v551 = vpop.f32.mrf.mxu0
      %v552 = vpop.f32.mrf.mxu0
      %v553 = vadd.f32 %v426, %v552
      %v554 = vpop.f32.mrf.mxu0
      %555 = vmatprep.mubr.bf16.mxu0 0
      %556 = vmatmul.mubr.bf16.gmra.mxu0 %v404
      %v557 = vpop.f32.mrf.mxu0
      %v558 = vadd.f32 %v426, %v557
      %v559 = vpop.f32.mrf.mxu0
      %v560 = vpop.f32.mrf.mxu0
      %v561 = vadd.f32 %v426, %v560
      %v562 = vpop.f32.mrf.mxu0
      %563 = vmatprep.mubr.bf16.mxu0 0
      %564 = vmatmul.mubr.bf16.gmra.mxu0 %v405
      %v565 = vpop.f32.mrf.mxu0
      %v566 = vadd.f32 %v426, %v565
      %v567 = vpop.f32.mrf.mxu0
      %v568 = vpop.f32.mrf.mxu0
      %v569 = vadd.f32 %v426, %v568
      %v570 = vpop.f32.mrf.mxu0
      %571 = vdwg.mxu0
      %v572 = vmax.f32 %v510, 0.0
      %v573 = vmax.f32 %v513, 0.0
      %v574 = vmax.f32 %v518, 0.0
      %v575 = vmax.f32 %v521, 0.0
      %v576 = vmax.f32 %v526, 0.0
      %v577 = vmax.f32 %v529, 0.0
      %v578 = vmax.f32 %v534, 0.0
      %v579 = vmax.f32 %v537, 0.0
      %v580 = vmax.f32 %v542, 0.0
      %v581 = vmax.f32 %v545, 0.0
      %v582 = vmax.f32 %v550, 0.0
      %v583 = vmax.f32 %v553, 0.0
      %v584 = vmax.f32 %v558, 0.0
      %v585 = vmax.f32 %v561, 0.0
      %v586 = vmax.f32 %v566, 0.0
      %v587 = vmax.f32 %v569, 0.0
      %v588 = vpack.c.bf16 %v573, %v572
      %v589 = vpack.c.bf16 %v575, %v574
      %v590 = vpack.c.bf16 %v577, %v576
      %v591 = vpack.c.bf16 %v579, %v578
      %v592 = vpack.c.bf16 %v581, %v580
      %v593 = vpack.c.bf16 %v583, %v582
      %v594 = vpack.c.bf16 %v585, %v584
      %v595 = vpack.c.bf16 %v587, %v586
      %v596 = vld [vmem:[%s1 + $0x58] sm:$0xf]
      %v597 = vld [vmem:[%s1 + $0x5c] sm:$0xf]
      %v598 = vld [vmem:[%s1 + $0x60] sm:$0xf]
      %v599 = vld [vmem:[%s1 + $0x64] sm:$0xf]
      %v600 = vld [vmem:[%s1 + $0x68] sm:$0xf]
      %v601 = vld [vmem:[%s1 + $0x6c] sm:$0xf]
      %v602 = vld [vmem:[%s1 + $0x70] sm:$0xf]
      %v603 = vld [vmem:[%s1 + $0x74] sm:$0xf]
      %v604 = vld [vmem:[%s1 + $0x78] sm:$0xf]
      %v605 = vld [vmem:[%s1 + $0x7c] sm:$0xf]
      %v606 = vld [vmem:[%s1 + $0x80] sm:$0xf]
      %v607 = vld [vmem:[%s1 + $0x84] sm:$0xf]
      %v608 = vld [vmem:[%s1 + $0x88] sm:$0xf]
      %v609 = vld [vmem:[%s1 + $0x8c] sm:$0xf]
      %v610 = vld [vmem:[%s1 + $0x90] sm:$0xf]
      %v611 = vld [vmem:[%s1 + $0x94] sm:$0xf]
      %v612 = vld [vmem:[%s2 + $0x2] sm:$0x1]
      %v613 = vlaneseq
      %v614 = vshrl.u32 %v613, 7
      %v615 = vsub.s32 0, %v614
      %v616 = vrot.slane %v612, %v615
      %v633 = vunpack.c.l.b16 %v596
      %v634 = vunpack.c.l.b16 %v597
      %v635 = vunpack.c.l.b16 %v598
      %v636 = vunpack.c.l.b16 %v599
      %v637 = vunpack.c.l.b16 %v600
      %v638 = vunpack.c.l.b16 %v601
      %v639 = vunpack.c.l.b16 %v602
      %v640 = vunpack.c.l.b16 %v603
      %v641 = vunpack.c.l.b16 %v604
      %v642 = vunpack.c.l.b16 %v605
      %v643 = vunpack.c.l.b16 %v606
      %v644 = vunpack.c.l.b16 %v607
      %v645 = vunpack.c.l.b16 %v608
      %v646 = vunpack.c.l.b16 %v609
      %v647 = vunpack.c.l.b16 %v610
      %v648 = vunpack.c.l.b16 %v611
      %v649 = vpack.c.b16 %v634, %v633
      %v650 = vpack.c.b16 %v636, %v635
      %v651 = vpack.c.b16 %v638, %v637
      %v652 = vpack.c.b16 %v640, %v639
      %v653 = vpack.c.b16 %v642, %v641
      %v654 = vpack.c.b16 %v644, %v643
      %v655 = vpack.c.b16 %v646, %v645
      %v656 = vpack.c.b16 %v648, %v647
      %665 = vmatprep.subr.bf16.mxu0 0
      %666 = vmatpush1.bf16.msra.mxu0 %v656
      %667 = vmatprep.subr.bf16.mxu0 0
      %668 = vmatpush1.bf16.msra.mxu0 %v655
      %669 = vmatprep.subr.bf16.mxu0 0
      %670 = vmatpush1.bf16.msra.mxu0 %v654
      %671 = vmatprep.subr.bf16.mxu0 0
      %672 = vmatpush1.bf16.msra.mxu0 %v653
      %673 = vmatprep.subr.bf16.mxu0 0
      %674 = vmatpush1.bf16.msra.mxu0 %v652
      %675 = vmatprep.subr.bf16.mxu0 0
      %676 = vmatpush1.bf16.msra.mxu0 %v651
      %677 = vmatprep.subr.bf16.mxu0 0
      %678 = vmatpush1.bf16.msra.mxu0 %v650
      %679 = vmatprep.subr.bf16.mxu0 0
      %680 = vmatpush1.bf16.msra.mxu0 %v649
      %681 = vmatprep.subr.bf16.mxu0 0
      %682 = vmatpush2.bf16.msra.mxu0 0
      %683 = vmatprep.subr.bf16.mxu0 0
      %684 = vmatpush2.bf16.msra.mxu0 0
      %685 = vmatprep.subr.bf16.mxu0 0
      %686 = vmatpush2.bf16.msra.mxu0 0
      %687 = vmatprep.subr.bf16.mxu0 0
      %688 = vmatpush2.bf16.msra.mxu0 0
      %689 = vmatprep.subr.bf16.mxu0 0
      %690 = vmatpush2.bf16.msra.mxu0 0
      %691 = vmatprep.subr.bf16.mxu0 0
      %692 = vmatpush2.bf16.msra.mxu0 0
      %693 = vmatprep.subr.bf16.mxu0 0
      %694 = vmatpush2.bf16.msra.mxu0 0
      %695 = vmatprep.subr.bf16.mxu0 0
      %696 = vmatpush2.bf16.msra.mxu0 0
      %697 = vmatprep.mubr.bf16.mxu0 0
      %698 = vmatmul.mubr.bf16.gmra.mxu0 %v588
      %v699 = vpop.f32.mrf.mxu0
      %v700 = vadd.f32 %v616, %v699
      %v701 = vpop.f32.mrf.mxu0
      %v702 = vpop.f32.mrf.mxu0
      %v703 = vadd.f32 %v616, %v702
      %v704 = vpop.f32.mrf.mxu0
      %705 = vmatprep.mubr.bf16.mxu0 0
      %706 = vmatmul.mubr.bf16.gmra.mxu0 %v589
      %v707 = vpop.f32.mrf.mxu0
      %v708 = vadd.f32 %v616, %v707
      %v709 = vpop.f32.mrf.mxu0
      %v710 = vpop.f32.mrf.mxu0
      %v711 = vadd.f32 %v616, %v710
      %v712 = vpop.f32.mrf.mxu0
      %713 = vmatprep.mubr.bf16.mxu0 0
      %714 = vmatmul.mubr.bf16.gmra.mxu0 %v590
      %v715 = vpop.f32.mrf.mxu0
      %v716 = vadd.f32 %v616, %v715
      %v717 = vpop.f32.mrf.mxu0
      %v718 = vpop.f32.mrf.mxu0
      %v719 = vadd.f32 %v616, %v718
      %v720 = vpop.f32.mrf.mxu0
      %721 = vmatprep.mubr.bf16.mxu0 0
      %722 = vmatmul.mubr.bf16.gmra.mxu0 %v591
      %v723 = vpop.f32.mrf.mxu0
      %v724 = vadd.f32 %v616, %v723
      %v725 = vpop.f32.mrf.mxu0
      %v726 = vpop.f32.mrf.mxu0
      %v727 = vadd.f32 %v616, %v726
      %v728 = vpop.f32.mrf.mxu0
      %729 = vmatprep.mubr.bf16.mxu0 0
      %730 = vmatmul.mubr.bf16.gmra.mxu0 %v592
      %v731 = vpop.f32.mrf.mxu0
      %v732 = vadd.f32 %v616, %v731
      %v733 = vpop.f32.mrf.mxu0
      %v734 = vpop.f32.mrf.mxu0
      %v735 = vadd.f32 %v616, %v734
      %v736 = vpop.f32.mrf.mxu0
      %737 = vmatprep.mubr.bf16.mxu0 0
      %738 = vmatmul.mubr.bf16.gmra.mxu0 %v593
      %v739 = vpop.f32.mrf.mxu0
      %v740 = vadd.f32 %v616, %v739
      %v741 = vpop.f32.mrf.mxu0
      %v742 = vpop.f32.mrf.mxu0
      %v743 = vadd.f32 %v616, %v742
      %v744 = vpop.f32.mrf.mxu0
      %745 = vmatprep.mubr.bf16.mxu0 0
      %746 = vmatmul.mubr.bf16.gmra.mxu0 %v594
      %v747 = vpop.f32.mrf.mxu0
      %v748 = vadd.f32 %v616, %v747
      %v749 = vpop.f32.mrf.mxu0
      %v750 = vpop.f32.mrf.mxu0
      %v751 = vadd.f32 %v616, %v750
      %v752 = vpop.f32.mrf.mxu0
      %753 = vmatprep.mubr.bf16.mxu0 0
      %754 = vmatmul.mubr.bf16.gmra.mxu0 %v595
      %v755 = vpop.f32.mrf.mxu0
      %v756 = vadd.f32 %v616, %v755
      %v757 = vpop.f32.mrf.mxu0
      %v758 = vpop.f32.mrf.mxu0
      %v759 = vadd.f32 %v616, %v758
      %v760 = vpop.f32.mrf.mxu0
      %761 = vdwg.mxu0
      %v762 = vmax.f32 %v700, 0.0
      %v763 = vmax.f32 %v703, 0.0
      %v764 = vmax.f32 %v708, 0.0
      %v765 = vmax.f32 %v711, 0.0
      %v766 = vmax.f32 %v716, 0.0
      %v767 = vmax.f32 %v719, 0.0
      %v768 = vmax.f32 %v724, 0.0
      %v769 = vmax.f32 %v727, 0.0
      %v770 = vmax.f32 %v732, 0.0
      %v771 = vmax.f32 %v735, 0.0
      %v772 = vmax.f32 %v740, 0.0
      %v773 = vmax.f32 %v743, 0.0
      %v774 = vmax.f32 %v748, 0.0
      %v775 = vmax.f32 %v751, 0.0
      %v776 = vmax.f32 %v756, 0.0
      %v777 = vmax.f32 %v759, 0.0
      %v778 = vld [vmem:[%s2 + $0x3] sm:$0x1]
      %v779 = vlaneseq
      %v780 = vshrl.u32 %v779, 7
      %v781 = vsub.s32 0, %v780
      %v782 = vrot.slane %v778, %v781
      %v783 = vmul.f32 %v762, %v782
      %v784 = vmul.f32 %v763, %v782
      %v785 = vmul.f32 %v764, %v782
      %v786 = vmul.f32 %v765, %v782
      %v787 = vmul.f32 %v766, %v782
      %v788 = vmul.f32 %v767, %v782
      %v789 = vmul.f32 %v768, %v782
      %v790 = vmul.f32 %v769, %v782
      %v791 = vmul.f32 %v770, %v782
      %v792 = vmul.f32 %v771, %v782
      %v793 = vmul.f32 %v772, %v782
      %v794 = vmul.f32 %v773, %v782
      %v795 = vmul.f32 %v774, %v782
      %v796 = vmul.f32 %v775, %v782
      %v797 = vmul.f32 %v776, %v782
      %v798 = vmul.f32 %v777, %v782
      %799 = vadd.xlane.f32.xlu0 %v783
      %v800 = vpop.xlane.xlu0 %799
      %801 = vadd.xlane.f32.xlu0 %v784
      %v802 = vpop.xlane.xlu0 %801
      %803 = vadd.xlane.f32.xlu0 %v785
      %v804 = vpop.xlane.xlu0 %803
      %805 = vadd.xlane.f32.xlu0 %v786
      %v806 = vpop.xlane.xlu0 %805
      %807 = vadd.xlane.f32.xlu0 %v787
      %v808 = vpop.xlane.xlu0 %807
      %809 = vadd.xlane.f32.xlu0 %v788
      %v810 = vpop.xlane.xlu0 %809
      %811 = vadd.xlane.f32.xlu0 %v789
      %v812 = vpop.xlane.xlu0 %811
      %813 = vadd.xlane.f32.xlu0 %v790
      %v814 = vpop.xlane.xlu0 %813
      %815 = vadd.xlane.f32.xlu0 %v791
      %v816 = vpop.xlane.xlu0 %815
      %817 = vadd.xlane.f32.xlu0 %v792
      %v818 = vpop.xlane.xlu0 %817
      %819 = vadd.xlane.f32.xlu0 %v793
      %v820 = vpop.xlane.xlu0 %819
      %821 = vadd.xlane.f32.xlu0 %v794
      %v822 = vpop.xlane.xlu0 %821
      %823 = vadd.xlane.f32.xlu0 %v795
      %v824 = vpop.xlane.xlu0 %823
      %825 = vadd.xlane.f32.xlu0 %v796
      %v826 = vpop.xlane.xlu0 %825
      %827 = vadd.xlane.f32.xlu0 %v797
      %v828 = vpop.xlane.xlu0 %827
      %829 = vadd.xlane.f32.xlu0 %v798
      %v830 = vpop.xlane.xlu0 %829
      %v831 = vld [vmem:[%s2 + $0x4] sm:$0x1]
      %v832 = vlaneseq
      %v833 = vshrl.u32 %v832, 7
      %v834 = vsub.s32 0, %v833
      %v835 = vrot.slane %v831, %v834
      %v836 = vadd.f32 %v800, %v835
      %v837 = vadd.f32 %v802, %v835
      %v838 = vadd.f32 %v804, %v835
      %v839 = vadd.f32 %v806, %v835
      %v840 = vadd.f32 %v808, %v835
      %v841 = vadd.f32 %v810, %v835
      %v842 = vadd.f32 %v812, %v835
      %v843 = vadd.f32 %v814, %v835
      %v844 = vadd.f32 %v816, %v835
      %v845 = vadd.f32 %v818, %v835
      %v846 = vadd.f32 %v820, %v835
      %v847 = vadd.f32 %v822, %v835
      %v848 = vadd.f32 %v824, %v835
      %v849 = vadd.f32 %v826, %v835
      %v850 = vadd.f32 %v828, %v835
      %v851 = vadd.f32 %v830, %v835
      %v852 = vxor.u32 %v836, 2147483648
      %v853 = vxor.u32 %v837, 2147483648
      %v854 = vxor.u32 %v838, 2147483648
      %v855 = vxor.u32 %v839, 2147483648
      %v856 = vxor.u32 %v840, 2147483648
      %v857 = vxor.u32 %v841, 2147483648
      %v858 = vxor.u32 %v842, 2147483648
      %v859 = vxor.u32 %v843, 2147483648
      %v860 = vxor.u32 %v844, 2147483648
      %v861 = vxor.u32 %v845, 2147483648
      %v862 = vxor.u32 %v846, 2147483648
      %v863 = vxor.u32 %v847, 2147483648
      %v864 = vxor.u32 %v848, 2147483648
      %v865 = vxor.u32 %v849, 2147483648
      %v866 = vxor.u32 %v850, 2147483648
      %v867 = vxor.u32 %v851, 2147483648
      %v868 = vmul.f32 %v852, 1.442695
      %v869 = vpow.pop %v868
      %v870 = vmul.f32 %v853, 1.442695
      %v871 = vpow.pop %v870
      %v872 = vmul.f32 %v854, 1.442695
      %v873 = vpow.pop %v872
      %v874 = vmul.f32 %v855, 1.442695
      %v875 = vpow.pop %v874
      %v876 = vmul.f32 %v856, 1.442695
      %v877 = vpow.pop %v876
      %v878 = vmul.f32 %v857, 1.442695
      %v879 = vpow.pop %v878
      %v880 = vmul.f32 %v858, 1.442695
      %v881 = vpow.pop %v880
      %v882 = vmul.f32 %v859, 1.442695
      %v883 = vpow.pop %v882
      %v884 = vmul.f32 %v860, 1.442695
      %v885 = vpow.pop %v884
      %v886 = vmul.f32 %v861, 1.442695
      %v887 = vpow.pop %v886
      %v888 = vmul.f32 %v862, 1.442695
      %v889 = vpow.pop %v888
      %v890 = vmul.f32 %v863, 1.442695
      %v891 = vpow.pop %v890
      %v892 = vmul.f32 %v864, 1.442695
      %v893 = vpow.pop %v892
      %v894 = vmul.f32 %v865, 1.442695
      %v895 = vpow.pop %v894
      %v896 = vmul.f32 %v866, 1.442695
      %v897 = vpow.pop %v896
      %v898 = vmul.f32 %v867, 1.442695
      %v899 = vpow.pop %v898
      %v900 = vadd.f32 %v869, 1.0
      %v901 = vadd.f32 %v871, 1.0
      %v902 = vadd.f32 %v873, 1.0
      %v903 = vadd.f32 %v875, 1.0
      %v904 = vadd.f32 %v877, 1.0
      %v905 = vadd.f32 %v879, 1.0
      %v906 = vadd.f32 %v881, 1.0
      %v907 = vadd.f32 %v883, 1.0
      %v908 = vadd.f32 %v885, 1.0
      %v909 = vadd.f32 %v887, 1.0
      %v910 = vadd.f32 %v889, 1.0
      %v911 = vadd.f32 %v891, 1.0
      %v912 = vadd.f32 %v893, 1.0
      %v913 = vadd.f32 %v895, 1.0
      %v914 = vadd.f32 %v897, 1.0
      %v915 = vadd.f32 %v899, 1.0
      %v916 = vrcp.pop %v900
      %v917 = vmul.f32 1.0, %v916
      %v918 = vrcp.pop %v901
      %v919 = vmul.f32 1.0, %v918
      %v920 = vrcp.pop %v902
      %v921 = vmul.f32 1.0, %v920
      %v922 = vrcp.pop %v903
      %v923 = vmul.f32 1.0, %v922
      %v924 = vrcp.pop %v904
      %v925 = vmul.f32 1.0, %v924
      %v926 = vrcp.pop %v905
      %v927 = vmul.f32 1.0, %v926
      %v928 = vrcp.pop %v906
      %v929 = vmul.f32 1.0, %v928
      %v930 = vrcp.pop %v907
      %v931 = vmul.f32 1.0, %v930
      %v932 = vrcp.pop %v908
      %v933 = vmul.f32 1.0, %v932
      %v934 = vrcp.pop %v909
      %v935 = vmul.f32 1.0, %v934
      %v936 = vrcp.pop %v910
      %v937 = vmul.f32 1.0, %v936
      %v938 = vrcp.pop %v911
      %v939 = vmul.f32 1.0, %v938
      %v940 = vrcp.pop %v912
      %v941 = vmul.f32 1.0, %v940
      %v942 = vrcp.pop %v913
      %v943 = vmul.f32 1.0, %v942
      %v944 = vrcp.pop %v914
      %v945 = vmul.f32 1.0, %v944
      %v946 = vrcp.pop %v915
      %v947 = vmul.f32 1.0, %v946
      %vm948 = vcmask 7168
      %949 = vst.msk [vmem:[%s172] sm:$0xff] %vm948, %v917
      %950 = vst.msk [vmem:[%s172 + $0x8] sm:$0xff] %vm948, %v919
      %951 = vst.msk [vmem:[%s172 + $0x10] sm:$0xff] %vm948, %v921
      %952 = vst.msk [vmem:[%s172 + $0x18] sm:$0xff] %vm948, %v923
      %953 = vst.msk [vmem:[%s172 + $0x20] sm:$0xff] %vm948, %v925
      %954 = vst.msk [vmem:[%s172 + $0x28] sm:$0xff] %vm948, %v927
      %955 = vst.msk [vmem:[%s172 + $0x30] sm:$0xff] %vm948, %v929
      %956 = vst.msk [vmem:[%s172 + $0x38] sm:$0xff] %vm948, %v931
      %957 = vst.msk [vmem:[%s172 + $0x40] sm:$0xff] %vm948, %v933
      %958 = vst.msk [vmem:[%s172 + $0x48] sm:$0xff] %vm948, %v935
      %959 = vst.msk [vmem:[%s172 + $0x50] sm:$0xff] %vm948, %v937
      %960 = vst.msk [vmem:[%s172 + $0x58] sm:$0xff] %vm948, %v939
      %961 = vst.msk [vmem:[%s172 + $0x60] sm:$0xff] %vm948, %v941
      %962 = vst.msk [vmem:[%s172 + $0x68] sm:$0xff] %vm948, %v943
      %963 = vst.msk [vmem:[%s172 + $0x70] sm:$0xff] %vm948, %v945
      %964 = vst.msk [vmem:[%s172 + $0x78] sm:$0xff] %vm948, %v947
      %s965 = smul.u32 16, %s14
      %p966 = scmp.lt.s32.totalorder %s965, 47
      %s967 = scalar_select %p966, %s965, 47
      %s968 = smul.addr %s967, 8
      %s969 = scalar_lea.vmem %s3, %s968
      // Predicated region
      $region33: #{tpu_custom_call.1} parent=31 // pred_check
        %p970 = pneg %p100
      $region34: #{tpu_custom_call.1} parent=31 // pred_check_branch
        %972 = sbr.rel (%p970) target = $region36
      $region35: #{tpu_custom_call.1} parent=31 // pred_region
        %s973 = smul.u32 16, %s14
      $region36: #{tpu_custom_call.1} parent=31 // pred_fallthru
        _
    $region32: #{tpu_custom_call.1} parent=5 // pred_fallthru
      _
    %p974 = scmp.le.s32.totalorder 2, %s9
    // Predicated region
    $region37: #{tpu_custom_call.1} parent=5 // pred_check
      %p975 = pneg %p974
    $region38: #{tpu_custom_call.1} parent=5 // pred_check_branch
      %977 = sbr.rel (%p975) target = $region40
    $region39: #{tpu_custom_call.1} parent=5 // pred_region
      %s978 = ssub.s32 %s9, 2
      // Predicated region
      $region41: #{tpu_custom_call.1} parent=39 // pred_check
        %p979 = pneg %p106
      $region42: #{tpu_custom_call.1} parent=39 // pred_check_branch
        %981 = sbr.rel (%p979) target = $region44
      $region43: #{tpu_custom_call.1} parent=39 // pred_region
        %s982 = smul.u32 16, %s15
        %p983 = scmp.lt.s32.totalorder %s982, 47
        %s984 = scalar_select %p983, %s982, 47
        %s985 = smul.addr %s984, 8
        %s986 = scalar_lea.vmem %s3, %s985
      $region44: #{tpu_custom_call.1} parent=39 // pred_fallthru
        _
    $region40: #{tpu_custom_call.1} parent=5 // pred_fallthru
      _
  $region6: #{tpu_custom_call.1} parent=0 // loop_footer
    %s13 = sadd.s32 1, %s9
  $region7: #{tpu_custom_call.1} parent=0 // loop_footer_branch
    %8 = sbr.rel target = $region3
  $region8: #{tpu_custom_call.1} parent=0 // loop_exit
    _

</llo_original>
